<compile_context>
chip_gen: v5e
topology: v5e:2x2
jax: 0.10.0
libtpu: 0.0.40
codegen_flags: <defaults>
</compile_context>

<pallas_src>
import functools

import jax
import jax.numpy as jnp
from jax.experimental import pallas as pl
from jax.experimental.pallas import tpu as pltpu

GAMMA = 2.0  # module default; gamma==2 lets us use jnp.square instead of pow


def focal_loss_kernel(logits_ref, target_ref, out_ref, *, n_total):
    i = pl.program_id(0)
    tile_n = logits_ref.shape[0]
    c = logits_ref.shape[1]

    x = logits_ref[...].astype(jnp.float32)            # (TN, C)
    t = target_ref[...]                                 # (TN, 1) int32

    # Row-wise logsumexp over the class (lane) axis -- the single full-width exp.
    m = jnp.max(x, axis=-1, keepdims=True)               # (TN, 1)
    lse = m + jnp.log(jnp.sum(jnp.exp(x - m), axis=-1, keepdims=True))

    # Gather the target-class logit via a one-hot select against a (1, C) class
    # iota (no dynamic gather, no full (TN, C) iota, no (TN, C) logp temporary).
    cls = jax.lax.broadcasted_iota(jnp.int32, (1, c), 1)  # (1, C)
    x_t = jnp.sum(jnp.where(cls == t, x, 0.0), axis=-1, keepdims=True)  # (TN, 1)

    logp_t = x_t - lse                                    # (TN, 1)
    p_t = jnp.exp(logp_t)                                 # cheap vector exp
    ce = -logp_t                                          # nll_loss, reduction='none'
    loss = jnp.square(1.0 - p_t) * ce                     # gamma == 2.0 focal term
    # TODO(synk): alpha weighting (alpha=None here) would be one per-class gather;
    # a non-integer gamma would need a pow path on the EUP.

    # Mask rows past the true N: the last block of the *unpadded* logits reads
    # out-of-bounds garbage, which is discarded by this select.
    row = i * tile_n + jax.lax.broadcasted_iota(jnp.int32, loss.shape, 0)
    loss = jnp.where(row < n_total, loss, 0.0)

    # One partial sum per tile, written to a lane-dense f32 block.  No carried
    # state, so the grid axis is "parallel" (megacore-shardable on v7x); the
    # tiny cross-tile reduction and the /N are done in JAX outside.
    out_ref[0] = jnp.full((8, 128), jnp.sum(loss), dtype=jnp.float32)


def focal_loss(logits, target, *, tile_n=None,
               vmem_limit_bytes=48 * 1024 * 1024):
    n, c = logits.shape
    itemsize = jnp.dtype(logits.dtype).itemsize
    packing = max(8, 32 // itemsize)        # 8 for f32, 16 for bf16, 32 for int8/fp8
    c_lanes = max(pl.cdiv(c, 128) * 128, 128)

    if tile_n is None:
        # Per-grid-step VMEM estimate:
        #   2x (double-buffered) logits block in the input dtype,
        #   ~3 live full-width f32 temporaries (cast / shifted / exp),
        #   2x lane-padded (TN, 1) int32 target column,
        #   a few (TN, 1) f32 column temporaries.
        # ~24 MiB/block keeps the conservative estimate well inside the 48 MiB
        # scoped limit (v7x physical VMEM is 64 MiB; v5e/v6e have 128 MiB).
        bytes_per_row = (2 * c_lanes * itemsize
                         + 3 * c_lanes * 4
                         + 2 * 128 * 4
                         + 4 * 128 * 4)
        tile_n = (24 * 1024 * 1024) // bytes_per_row
        tile_n = min(tile_n, 8192)
    tile_n = min(tile_n, pl.cdiv(n, packing) * packing)
    tile_n = max(packing, (tile_n // packing) * packing)
    # TODO(synk): no class-axis tiling / online-softmax path -- extremely large C
    # (block bigger than VMEM even at tile_n == packing) is unsupported.

    n_tiles = pl.cdiv(n, tile_n)
    n_pad = n_tiles * tile_n

    # Only the tiny target array is padded so its blocks are always in-bounds;
    # the logits stay unpadded (last-block OOB rows are masked in-kernel).
    target_i32 = target.astype(jnp.int32)
    if n_pad > n:
        target_i32 = jnp.pad(target_i32, (0, n_pad - n))
    target2d = target_i32.reshape(n_pad, 1)

    kernel = functools.partial(focal_loss_kernel, n_total=n)
    partials = pl.pallas_call(
        kernel,
        out_shape=jax.ShapeDtypeStruct((n_tiles, 8, 128), jnp.float32),
        grid_spec=pltpu.PrefetchScalarGridSpec(
            num_scalar_prefetch=0,
            grid=(n_tiles,),
            in_specs=[
                pl.BlockSpec((tile_n, c), lambda i: (i, 0)),
                pl.BlockSpec((tile_n, 1), lambda i: (i, 0)),
            ],
            out_specs=pl.BlockSpec((1, 8, 128), lambda i: (i, 0, 0)),
        ),
        compiler_params=pltpu.CompilerParams(
            dimension_semantics=("parallel",),
            vmem_limit_bytes=vmem_limit_bytes),
    )(logits, target2d)

    # Tiny final reduction over n_tiles partials + the mean division, in JAX.
    return jnp.sum(partials[:, 0, 0]) / n


def focal_loss_ref(logits, target):
    logp = jax.nn.log_softmax(logits.astype(jnp.float32), axis=1)
    p = jnp.exp(logp)
    logp_t = jnp.take_along_axis(logp, target[:, None], axis=1)[:, 0]
    p_t = jnp.take_along_axis(p, target[:, None], axis=1)[:, 0]
    ce = -logp_t
    loss = (1.0 - p_t) ** GAMMA * ce
    return loss.mean()


if __name__ == "__main__":
    key = jax.random.PRNGKey(0)
    k1, k2 = jax.random.split(key)
    N, C = 32, 8
    logits = jax.random.normal(k1, (N, C), dtype=jnp.float32)
    target = jax.random.randint(k2, (N,), 0, C, dtype=jnp.int32)

    out = jax.block_until_ready(focal_loss(logits, target))
    ref = focal_loss_ref(logits, target)
    assert jnp.allclose(out, ref, atol=1e-5, rtol=1e-5), (out, ref)

    # Exercise the unpadded-logits / masked last-block / multi-tile path.
    k3, k4 = jax.random.split(k1)
    N2, C2 = 50, 8
    logits2 = jax.random.normal(k3, (N2, C2), dtype=jnp.float32)
    target2 = jax.random.randint(k4, (N2,), 0, C2, dtype=jnp.int32)
    out2 = jax.block_until_ready(focal_loss(logits2, target2, tile_n=16))
    ref2 = focal_loss_ref(logits2, target2)
    assert jnp.allclose(out2, ref2, atol=1e-5, rtol=1e-5), (out2, ref2)

    print("KERNEL_OK")
</pallas_src>

<mosaic_0001>
module attributes {stable_mosaic.version = 11 : i64} {
  func.func @focal_loss_kernel(%arg0: i32, %arg1: memref<32x8xf32, #tpu.memory_space<vmem>>, %arg2: memref<32x1xi32, #tpu.memory_space<vmem>>, %arg3: memref<1x8x128xf32, #tpu.memory_space<vmem>>) attributes {dimension_semantics = [#tpu.dimension_semantics<parallel>], iteration_bounds = array<i64: 1>, scalar_prefetch = 0 : i64, scratch_operands = 0 : i64, tpu.core_type = #tpu.core_type<tc>, window_params = [{transform_indices = @transform_0, window_bounds = array<i64: 32, 8>}, {transform_indices = @transform_1, window_bounds = array<i64: 32, 1>}, {transform_indices = @transform_2, window_bounds = array<i64: 1, 8, 128>}]} {
    %c0 = arith.constant 0 : index
    %c0_0 = arith.constant 0 : index
    %0 = vector.load %arg1[%c0, %c0_0] : memref<32x8xf32, #tpu.memory_space<vmem>>, vector<32x8xf32>
    %c0_1 = arith.constant 0 : index
    %c0_2 = arith.constant 0 : index
    %1 = vector.load %arg2[%c0_1, %c0_2] : memref<32x1xi32, #tpu.memory_space<vmem>>, vector<32x1xi32>
    %cst = arith.constant dense<0xFF800000> : vector<32xf32>
    %2 = vector.multi_reduction <maximumf>, %0, %cst [1] : vector<32x8xf32> to vector<32xf32>
    %3 = vector.shape_cast %2 : vector<32xf32> to vector<32x1xf32>
    %4 = vector.broadcast %3 : vector<32x1xf32> to vector<32x8xf32>
    %5 = arith.subf %0, %4 : vector<32x8xf32>
    %6 = math.exp %5 : vector<32x8xf32>
    %cst_3 = arith.constant dense<0.000000e+00> : vector<32xf32>
    %7 = vector.multi_reduction <add>, %6, %cst_3 [1] : vector<32x8xf32> to vector<32xf32>
    %8 = vector.shape_cast %7 : vector<32xf32> to vector<32x1xf32>
    %9 = math.log %8 : vector<32x1xf32>
    %10 = arith.addf %3, %9 : vector<32x1xf32>
    %11 = tpu.iota {dimensions = array<i32: 1>} : vector<1x8xi32>
    %12 = vector.broadcast %11 : vector<1x8xi32> to vector<32x8xi32>
    %13 = vector.broadcast %1 : vector<32x1xi32> to vector<32x8xi32>
    %14 = arith.cmpi eq, %12, %13 : vector<32x8xi32>
    %cst_4 = arith.constant 0.000000e+00 : f32
    %15 = vector.broadcast %cst_4 : f32 to vector<32x8xf32>
    %16 = arith.select %14, %0, %15 : vector<32x8xi1>, vector<32x8xf32>
    %cst_5 = arith.constant dense<0.000000e+00> : vector<32xf32>
    %17 = vector.multi_reduction <add>, %16, %cst_5 [1] : vector<32x8xf32> to vector<32xf32>
    %18 = vector.shape_cast %17 : vector<32xf32> to vector<32x1xf32>
    %19 = arith.subf %18, %10 : vector<32x1xf32>
    %20 = math.exp %19 : vector<32x1xf32>
    %cst_6 = arith.constant 0.000000e+00 : f32
    %21 = vector.broadcast %cst_6 : f32 to vector<32x1xf32>
    %22 = arith.subf %21, %19 : vector<32x1xf32>
    %cst_7 = arith.constant 1.000000e+00 : f32
    %23 = vector.broadcast %cst_7 : f32 to vector<32x1xf32>
    %24 = arith.subf %23, %20 : vector<32x1xf32>
    %25 = arith.mulf %24, %24 : vector<32x1xf32>
    %26 = arith.mulf %25, %22 : vector<32x1xf32>
    %c32_i32 = arith.constant 32 : i32
    %27 = arith.muli %arg0, %c32_i32 : i32
    %28 = tpu.iota {dimensions = array<i32: 0>} : vector<32x1xi32>
    %29 = vector.broadcast %27 : i32 to vector<32x1xi32>
    %30 = arith.addi %29, %28 : vector<32x1xi32>
    %c32_i32_8 = arith.constant 32 : i32
    %31 = vector.broadcast %c32_i32_8 : i32 to vector<32x1xi32>
    %32 = arith.cmpi slt, %30, %31 : vector<32x1xi32>
    %cst_9 = arith.constant 0.000000e+00 : f32
    %33 = vector.broadcast %cst_9 : f32 to vector<32x1xf32>
    %34 = arith.select %32, %26, %33 : vector<32x1xi1>, vector<32x1xf32>
    %35 = vector.shape_cast %34 : vector<32x1xf32> to vector<1x32x1xf32>
    %cst_10 = arith.constant dense<0.000000e+00> : vector<1xf32>
    %36 = vector.multi_reduction <add>, %35, %cst_10 [1, 2] : vector<1x32x1xf32> to vector<1xf32>
    %37 = vector.shape_cast %36 : vector<1xf32> to vector<1x1x1xf32>
    %38 = vector.extract %37[0, 0, 0] : f32 from vector<1x1x1xf32>
    %39 = vector.broadcast %38 : f32 to vector<8x128xf32>
    %c0_11 = arith.constant 0 : index
    %c0_12 = arith.constant 0 : index
    %c0_13 = arith.constant 0 : index
    %40 = vector.load %arg3[%c0_11, %c0_12, %c0_13] : memref<1x8x128xf32, #tpu.memory_space<vmem>>, vector<1x8x128xf32>
    %41 = vector.shape_cast %40 : vector<1x8x128xf32> to vector<8x128xf32>
    %42 = vector.shape_cast %39 : vector<8x128xf32> to vector<1x8x128xf32>
    tpu.vector_store %arg3[%c0_11, %c0_12, %c0_13], %42 {strides = array<i32>} : memref<1x8x128xf32, #tpu.memory_space<vmem>>, vector<1x8x128xf32>,
    return
  }
  func.func @transform_0(%arg0: i32) -> (i32, i32) {
    %c0_i32 = arith.constant 0 : i32
    %c0_i32_0 = arith.constant 0 : i32
    return %arg0, %c0_i32 : i32, i32
  }
  func.func @transform_1(%arg0: i32) -> (i32, i32) {
    %c0_i32 = arith.constant 0 : i32
    %c0_i32_0 = arith.constant 0 : i32
    return %arg0, %c0_i32 : i32, i32
  }
  func.func @transform_2(%arg0: i32) -> (i32, i32, i32) {
    %c0_i32 = arith.constant 0 : i32
    %c0_i32_0 = arith.constant 0 : i32
    %c0_i32_1 = arith.constant 0 : i32
    return %arg0, %c0_i32, %c0_i32_0 : i32, i32, i32
  }
}

</mosaic_0001>

<llo_original>
// kernel: tpu_custom_call.1
$region0: #{tpu_custom_call.1}
  #allocation0 [shape = 'u32[]', space=smem, size = 0x4, offset = 0x4, fixed_abs, tag = 'smem constant byte address 0x4 - core index']
  #allocation1 [shape = 'u32[72,128]{1,0:T(1,128)}', space=vmem, size = 0x9000, scoped, tag = 'internal scratch']
  %s0 = inlined_call_operand.vmem [shape: f32[32,8], index: 0, kind: input, shape index: {}]
  %s1 = inlined_call_operand.vmem [shape: s32[32,1], index: 1, kind: input, shape index: {}]
  %s2 = inlined_call_operand.hbm [shape: f32[1,8,128], index: 2, kind: output, shape index: {}]
  %s3 = sld [smem:[#allocation0]]
  $region18: #{tpu_custom_call.1} parent=0
    _
  %s5 = ssub.s32 1, %s3
  %s6 = scalar_select 0, %s5, %s3
  $region1: #{tpu_custom_call.1} parent=0
    #allocation2 [shape = 'u8[4096]{0}', space=vmem, size = 0x1000, scoped, tag = 'output window, operand 0, single buffered']
    #allocation3 [shape = 's32[1]{0}', space=sflag, size = 0x4, scoped, tag = 'scoped memory for tpu_custom_call.1']
    %7 = vsyncpa [#allocation3], 0
    // Predicated region
    $region2: #{tpu_custom_call.1} parent=1 // pred_check
      _
    $region3: #{tpu_custom_call.1} parent=1 // pred_check_branch
      %9 = sbr.rel (0) target = $region5
    $region4: #{tpu_custom_call.1} parent=1 // pred_region
      _
    $region5: #{tpu_custom_call.1} parent=1 // pred_fallthru
      _
    // Predicated region
    $region6: #{tpu_custom_call.1} parent=1 // pred_check
      _
    $region7: #{tpu_custom_call.1} parent=1 // pred_check_branch
      %11 = sbr.rel (0) target = $region9
    $region8: #{tpu_custom_call.1} parent=1 // pred_region
      _
    $region9: #{tpu_custom_call.1} parent=1 // pred_fallthru
      _
    %v12 = vld [vmem:[%s0] sm:$0xff]
    %v13 = vld [vmem:[%s0 + $0x8] sm:$0xff]
    %v14 = vld [vmem:[%s0 + $0x10] sm:$0xff]
    %v15 = vld [vmem:[%s0 + $0x18] sm:$0xff]
    %v16 = vld [vmem:[%s1] sm:$0xff]
    %v17 = vld [vmem:[%s1 + $0x8] sm:$0xff]
    %v18 = vld [vmem:[%s1 + $0x10] sm:$0xff]
    %v19 = vld [vmem:[%s1 + $0x18] sm:$0xff]
    %vm20 = vcmask 64512
    %v21 = vsel %vm20, %v12, -inf
    %22 = vmax.xlane.f32.xlu0 %v21
    %v23 = vpop.xlane.xlu0 %22
    %v24 = vsel %vm20, %v13, -inf
    %25 = vmax.xlane.f32.xlu0 %v24
    %v26 = vpop.xlane.xlu0 %25
    %v27 = vsel %vm20, %v14, -inf
    %28 = vmax.xlane.f32.xlu0 %v27
    %v29 = vpop.xlane.xlu0 %28
    %v30 = vsel %vm20, %v15, -inf
    %31 = vmax.xlane.f32.xlu0 %v30
    %v32 = vpop.xlane.xlu0 %31
    %v33 = vsub.f32 %v12, %v23
    %v34 = vsub.f32 %v13, %v26
    %v35 = vsub.f32 %v14, %v29
    %v36 = vsub.f32 %v15, %v32
    %v37 = vmul.f32 %v33, 1.442695
    %v38 = vpow.pop %v37
    %v39 = vmul.f32 %v34, 1.442695
    %v40 = vpow.pop %v39
    %v41 = vmul.f32 %v35, 1.442695
    %v42 = vpow.pop %v41
    %v43 = vmul.f32 %v36, 1.442695
    %v44 = vpow.pop %v43
    %v45 = vsel %vm20, %v38, 0.0
    %46 = vadd.xlane.f32.xlu0 %v45
    %v47 = vpop.xlane.xlu0 %46
    %v48 = vsel %vm20, %v40, 0.0
    %49 = vadd.xlane.f32.xlu0 %v48
    %v50 = vpop.xlane.xlu0 %49
    %v51 = vsel %vm20, %v42, 0.0
    %52 = vadd.xlane.f32.xlu0 %v51
    %v53 = vpop.xlane.xlu0 %52
    %v54 = vsel %vm20, %v44, 0.0
    %55 = vadd.xlane.f32.xlu0 %v54
    %v56 = vpop.xlane.xlu0 %55
    %v57 = vlog2.pop %v47
    %v58 = vmul.f32 %v57, 0.6931472
    %v59 = vlog2.pop %v50
    %v60 = vmul.f32 %v59, 0.6931472
    %v61 = vlog2.pop %v53
    %v62 = vmul.f32 %v61, 0.6931472
    %v63 = vlog2.pop %v56
    %v64 = vmul.f32 %v63, 0.6931472
    %v65 = vadd.f32 %v23, %v58
    %v66 = vadd.f32 %v26, %v60
    %v67 = vadd.f32 %v29, %v62
    %v68 = vadd.f32 %v32, %v64
    %v69 = vlaneseq
    %v70 = vand.u32 %v69, 127
    %71 = vset.pattern.permute.xlu0 0
    %72 = vperm.xlu0 %71, %v16
    %v73 = vpop.permute.xlu0 %72
    %74 = vset.pattern.permute.xlu0 0
    %75 = vperm.xlu0 %74, %v17
    %v76 = vpop.permute.xlu0 %75
    %77 = vset.pattern.permute.xlu0 0
    %78 = vperm.xlu0 %77, %v18
    %v79 = vpop.permute.xlu0 %78
    %80 = vset.pattern.permute.xlu0 0
    %81 = vperm.xlu0 %80, %v19
    %v82 = vpop.permute.xlu0 %81
    %vm83 = vcmp.eq.s32.totalorder %v70, %v73
    %vm84 = vcmp.eq.s32.totalorder %v70, %v76
    %vm85 = vcmp.eq.s32.totalorder %v70, %v79
    %vm86 = vcmp.eq.s32.totalorder %v70, %v82
    %v87 = vsel %vm83, %v12, 0.0
    %v88 = vsel %vm84, %v13, 0.0
    %v89 = vsel %vm85, %v14, 0.0
    %v90 = vsel %vm86, %v15, 0.0
    %v91 = vsel %vm20, %v87, 0.0
    %92 = vadd.xlane.f32.xlu0 %v91
    %v93 = vpop.xlane.xlu0 %92
    %v94 = vsel %vm20, %v88, 0.0
    %95 = vadd.xlane.f32.xlu0 %v94
    %v96 = vpop.xlane.xlu0 %95
    %v97 = vsel %vm20, %v89, 0.0
    %98 = vadd.xlane.f32.xlu0 %v97
    %v99 = vpop.xlane.xlu0 %98
    %v100 = vsel %vm20, %v90, 0.0
    %101 = vadd.xlane.f32.xlu0 %v100
    %v102 = vpop.xlane.xlu0 %101
    %v103 = vsub.f32 %v93, %v65
    %v104 = vsub.f32 %v96, %v66
    %v105 = vsub.f32 %v99, %v67
    %v106 = vsub.f32 %v102, %v68
    %v107 = vmul.f32 %v103, 1.442695
    %v108 = vpow.pop %v107
    %v109 = vmul.f32 %v104, 1.442695
    %v110 = vpow.pop %v109
    %v111 = vmul.f32 %v105, 1.442695
    %v112 = vpow.pop %v111
    %v113 = vmul.f32 %v106, 1.442695
    %v114 = vpow.pop %v113
    %v115 = vsub.f32 0.0, %v103
    %v116 = vsub.f32 0.0, %v104
    %v117 = vsub.f32 0.0, %v105
    %v118 = vsub.f32 0.0, %v106
    %v119 = vsub.f32 1.0, %v108
    %v120 = vsub.f32 1.0, %v110
    %v121 = vsub.f32 1.0, %v112
    %v122 = vsub.f32 1.0, %v114
    %v123 = vmul.f32 %v119, %v119
    %v124 = vmul.f32 %v120, %v120
    %v125 = vmul.f32 %v121, %v121
    %v126 = vmul.f32 %v122, %v122
    %v127 = vmul.f32 %v123, %v115
    %v128 = vmul.f32 %v124, %v116
    %v129 = vmul.f32 %v125, %v117
    %v130 = vmul.f32 %v126, %v118
    %s131 = smul.u32 0, 32
    %v132 = vlaneseq
    %v133 = vshrl.u32 %v132, 7
    %v134 = vadd.s32 %v133, 8
    %v135 = vadd.s32 %v133, 16
    %v136 = vadd.s32 %v133, 24
    %v137 = vstv %s131
    %v138 = vadd.s32 %v137, %v133
    %v139 = vadd.s32 %v137, %v134
    %v140 = vadd.s32 %v137, %v135
    %v141 = vadd.s32 %v137, %v136
    %vm142 = vcmp.lt.s32.totalorder %v138, 32
    %vm143 = vcmp.lt.s32.totalorder %v139, 32
    %vm144 = vcmp.lt.s32.totalorder %v140, 32
    %vm145 = vcmp.lt.s32.totalorder %v141, 32
    %v146 = vsel %vm142, %v127, 0.0
    %v147 = vsel %vm143, %v128, 0.0
    %v148 = vsel %vm144, %v129, 0.0
    %v149 = vsel %vm145, %v130, 0.0
    %vm150 = vcmask 7168
    %v151 = vsel %vm150, %v146, 0.0
    %v152 = vsel %vm150, %v147, 0.0
    %v153 = vadd.f32 %v151, %v152
    %v154 = vsel %vm150, %v148, 0.0
    %v155 = vadd.f32 %v153, %v154
    %v156 = vsel %vm150, %v149, 0.0
    %v157 = vadd.f32 %v155, %v156
    %158 = vadd.xlane.f32.xlu0 %v157
    %v159 = vpop.xlane.xlu0 %158
    %v160 = vrot.slane %v159, 4
    %v161 = vadd.f32 %v159, %v160
    %v162 = vrot.slane %v161, 2
    %v163 = vadd.f32 %v161, %v162
    %v164 = vrot.slane %v163, 1
    %v165 = vadd.f32 %v163, %v164
    %s166 = vtos %v165
    %v167 = vstv %s166
    %168 = vst [vmem:[#allocation2] sm:$0xff] %v167
    // Predicated region
    $region10: #{tpu_custom_call.1} parent=1 // pred_check
      _
    $region11: #{tpu_custom_call.1} parent=1 // pred_check_branch
      %170 = sbr.rel (0) target = $region13
    $region12: #{tpu_custom_call.1} parent=1 // pred_region
      %172 = vsyncadd [#allocation3], 0
      %s174 = sshll.u32 [#allocation2], 4
      %s175 = int_to_ptr.vmem [resolvable:$true] %s174
      %s176 = sshll.u32 %s2, 4
      %s177 = int_to_ptr.hbm [resolvable:$true] %s176
      %179 = dma.vmem_to_hbm [thread:$0]  %s175, 128, %s177, [#allocation3]
    $region13: #{tpu_custom_call.1} parent=1 // pred_fallthru
      _
    // Predicated region
    $region14: #{tpu_custom_call.1} parent=1 // pred_check
      _
    $region15: #{tpu_custom_call.1} parent=1 // pred_check_branch
      %181 = sbr.rel (0) target = $region17
    $region16: #{tpu_custom_call.1} parent=1 // pred_region
      %183 = dma.done [#allocation3], 128
    $region17: #{tpu_custom_call.1} parent=1 // pred_fallthru
      _
    %184 = vsyncpa [#allocation3], 1

</llo_original>
